<compile_context>
chip_gen: v6e
topology: v6e:2x2x1
jax: 0.10.0
libtpu: 0.0.40
codegen_flags: <defaults>
</compile_context>

<pallas_src>
import functools

import jax
import jax.numpy as jnp
from jax import lax
from jax.experimental import pallas as pl
from jax.experimental.pallas import tpu as pltpu


def _hash_u32(x):
    # lowbias32 integer finalizer: cheap, well-mixed 32-bit hash (VPU-only ops).
    x = x ^ (x >> 16)
    x = x * jnp.uint32(0x7FEB352D)
    x = x ^ (x >> 15)
    x = x * jnp.uint32(0x846CA68B)
    x = x ^ (x >> 16)
    return x


def _sdpa_dropout_m1_kernel(seed_ref, qkv_ref, o_ref, *,
                            n_valid, inv_scale, dropout_p):
    # seed_ref: (1,) i32 SMEM (scalar prefetch).
    # qkv_ref:  (1, 3, N_pad, D) f32 VMEM block for this batch element:
    #           slot 0 row 0 = q, slot 1 = k (rows [0,n_valid)), slot 2 = v.
    # o_ref:    (1, 1, D) f32 VMEM block.
    q = qkv_ref[0, 0, 0:1, :]          # (1, D)
    k = qkv_ref[0, 1]                  # (N_pad, D)
    v = qkv_ref[0, 2]                  # (N_pad, D)
    n_pad = k.shape[0]

    # s = (q . k_n) / inv_scale as a lane reduction -> (N_pad, 1) column.
    recip_scale = jnp.float32(1.0 / inv_scale)
    s = jnp.sum(q * k, axis=-1, keepdims=True) * recip_scale   # (N_pad, 1)

    # Mask padded key rows (N was padded up to a sublane multiple).
    row_ids = lax.broadcasted_iota(jnp.int32, (n_pad, 1), 0)
    valid = row_ids < n_valid
    s = jnp.where(valid, s, -jnp.inf)

    # Numerically stable softmax along the (sublane) key axis.
    m = jnp.max(s, axis=0, keepdims=True)            # (1, 1)
    e = jnp.exp(s - m)                                # padded rows -> exp(-inf)=0
    denom = jnp.sum(e, axis=0, keepdims=True)         # (1, 1)

    if dropout_p <= 0.0:
        p = e * (jnp.float32(1.0) / denom)            # exact divide
    elif dropout_p >= 1.0:
        # torch dropout with p=1 zeroes everything.
        p = jnp.zeros_like(e)
    else:
        # Exact fused scale: softmax denominator and 1/(1-p) keep-scale.
        inv_denom = jnp.float32(1.0) / (denom * jnp.float32(1.0 - dropout_p))

        # Counter-hash RNG, one uniform u32 per key position; M == 1 so no row
        # term. Batch index is mixed in so each grid step gets its own stream.
        # TODO(synk): deterministic in-kernel hash, not torch's stateful RNG --
        # keep-rate matches in expectation but bitwise parity is impossible.
        seed_u = seed_ref[0].astype(jnp.uint32)
        b_u = lax.convert_element_type(pl.program_id(0), jnp.uint32)
        x = (seed_u
             + b_u * jnp.uint32(0x9E3779B1)
             + row_ids.astype(jnp.uint32) * jnp.uint32(0x85EBCA77))
        bits = _hash_u32(x)

        # Integer-domain compare: drop iff bits < dropout_p * 2^32.
        threshold = jnp.uint32(min(int(dropout_p * (1 << 32)), (1 << 32) - 1))
        keep = bits >= threshold
        p = jnp.where(keep, e * inv_denom, jnp.zeros_like(e))

    # output = sum_n p_n * v_n  -> (1, D) sublane reduction (XLU), no MXU.
    o = jnp.sum(p * v, axis=0, keepdims=True)          # (1, D)
    o_ref[...] = o[None]                                # (1, 1, D)


@functools.partial(jax.jit, static_argnames=("inv_scale_factor", "dropout_p"))
def sdpa_dropout(q1, k2, v3, seed, inv_scale_factor=3.14, dropout_p=0.5):
    B, M, D = q1.shape
    Bk, N, Dk = k2.shape
    assert Bk == B and Dk == D and v3.shape == (B, N, D)
    # TODO(synk): kernel is specialized to the module's single query row; a
    # general M > 1 path would tile M and use the MXU instead of the GEMV form.
    assert M == 1, "kernel specialized to M == 1 (as in the reference module)"

    n_pad = max(8, ((N + 7) // 8) * 8)   # pad key axis to a sublane multiple

    qf = q1.astype(jnp.float32)
    kf = k2.astype(jnp.float32)
    vf = v3.astype(jnp.float32)

    # Stack q/k/v into ONE contiguous operand -> one input DMA per grid step.
    q_p = jnp.pad(qf, ((0, 0), (0, n_pad - M), (0, 0)))
    k_p = jnp.pad(kf, ((0, 0), (0, n_pad - N), (0, 0)))
    v_p = jnp.pad(vf, ((0, 0), (0, n_pad - N), (0, 0)))
    qkv = jnp.stack([q_p, k_p, v_p], axis=1)            # (B, 3, n_pad, D)

    sd = jnp.asarray(seed, jnp.int32).reshape((1,))

    kernel = functools.partial(
        _sdpa_dropout_m1_kernel,
        n_valid=int(N),
        inv_scale=float(inv_scale_factor),
        dropout_p=float(dropout_p),
    )

    cost = pl.CostEstimate(
        flops=int(B * (4 * N * D + 8 * N)),
        transcendentals=int(B * N),
        bytes_accessed=int(qkv.size * 4 + B * D * 4 + 4),
    )

    out = pl.pallas_call(
        kernel,
        out_shape=jax.ShapeDtypeStruct((B, 1, D), jnp.float32),
        grid_spec=pltpu.PrefetchScalarGridSpec(
            num_scalar_prefetch=1,
            grid=(B,),
            in_specs=[pl.BlockSpec((1, 3, n_pad, D),
                                   lambda b, seed: (b, 0, 0, 0))],
            out_specs=pl.BlockSpec((1, 1, D), lambda b, seed: (b, 0, 0)),
        ),
        compiler_params=pltpu.CompilerParams(
            dimension_semantics=("parallel",)),
        cost_estimate=cost,
    )(sd, qkv)

    return out  # (B, 1, D) == (B, M, D)


def _reference_no_dropout(q, k, v, inv_scale):
    s = jnp.einsum("bmd,bnd->bmn", q, k,
                   precision=lax.Precision.HIGHEST) / inv_scale
    p = jax.nn.softmax(s, axis=-1)
    return jnp.einsum("bmn,bnd->bmd", p, v, precision=lax.Precision.HIGHEST)


if __name__ == "__main__":
    keys = jax.random.split(jax.random.PRNGKey(0), 6)

    # Module reference shapes: q1 (1,1,64), k2 (1,7,64), v3 (1,7,64).
    q1 = jax.random.normal(keys[0], (1, 1, 64), dtype=jnp.float32)
    k2 = jax.random.normal(keys[1], (1, 7, 64), dtype=jnp.float32)
    v3 = jax.random.normal(keys[2], (1, 7, 64), dtype=jnp.float32)

    # Correctness check against pure-JAX reference with dropout disabled.
    out_nd = sdpa_dropout(q1, k2, v3, seed=0,
                          inv_scale_factor=3.14, dropout_p=0.0)
    out_nd = jax.block_until_ready(out_nd)
    ref_nd = _reference_no_dropout(q1, k2, v3, 3.14)
    assert out_nd.shape == (1, 1, 64) and out_nd.dtype == jnp.float32
    assert bool(jnp.allclose(out_nd, ref_nd, rtol=1e-4, atol=1e-4))

    # Forward as in the module (dropout_p = 0.5).
    out = sdpa_dropout(q1, k2, v3, seed=0,
                       inv_scale_factor=3.14, dropout_p=0.5)
    out = jax.block_until_ready(out)
    assert out.shape == (1, 1, 64) and out.dtype == jnp.float32
    assert bool(jnp.all(jnp.isfinite(out)))

    # Batched path: several heads folded into ONE pallas_call (grid over B,
    # "parallel" so v7x shards the grid across both TensorCores).
    B = 4
    q1b = jax.random.normal(keys[3], (B, 1, 64), dtype=jnp.float32)
    k2b = jax.random.normal(keys[4], (B, 7, 64), dtype=jnp.float32)
    v3b = jax.random.normal(keys[5], (B, 7, 64), dtype=jnp.float32)
    outb = jax.block_until_ready(
        sdpa_dropout(q1b, k2b, v3b, seed=1,
                     inv_scale_factor=3.14, dropout_p=0.5))
    assert outb.shape == (B, 1, 64) and bool(jnp.all(jnp.isfinite(outb)))

    print("KERNEL_OK")
</pallas_src>

<mosaic_0001>
module attributes {stable_mosaic.version = 11 : i64} {
  func.func @_sdpa_dropout_m1_kernel(%arg0: i32, %arg1: memref<1xi32, #tpu.memory_space<smem>>, %arg2: memref<1x3x8x64xf32, #tpu.memory_space<vmem>>, %arg3: memref<1x1x64xf32, #tpu.memory_space<vmem>>) attributes {dimension_semantics = [#tpu.dimension_semantics<parallel>], iteration_bounds = array<i64: 1>, scalar_prefetch = 1 : i64, scratch_operands = 0 : i64, tpu.core_type = #tpu.core_type<tc>, window_params = [{transform_indices = @transform_0, window_bounds = array<i64: 1, 3, 8, 64>}, {transform_indices = @transform_1, window_bounds = array<i64: 1, 1, 64>}]} {
    %c0 = arith.constant 0 : index
    %c0_0 = arith.constant 0 : index
    %c0_1 = arith.constant 0 : index
    %c0_2 = arith.constant 0 : index
    %0 = vector.load %arg2[%c0, %c0_0, %c0_1, %c0_2] : memref<1x3x8x64xf32, #tpu.memory_space<vmem>>, vector<1x1x1x64xf32>
    %1 = vector.shape_cast %0 : vector<1x1x1x64xf32> to vector<1x64xf32>
    %c0_3 = arith.constant 0 : index
    %c1 = arith.constant 1 : index
    %c0_4 = arith.constant 0 : index
    %c0_5 = arith.constant 0 : index
    %2 = vector.load %arg2[%c0_3, %c1, %c0_4, %c0_5] : memref<1x3x8x64xf32, #tpu.memory_space<vmem>>, vector<1x1x8x64xf32>
    %3 = vector.shape_cast %2 : vector<1x1x8x64xf32> to vector<8x64xf32>
    %c0_6 = arith.constant 0 : index
    %c2 = arith.constant 2 : index
    %c0_7 = arith.constant 0 : index
    %c0_8 = arith.constant 0 : index
    %4 = vector.load %arg2[%c0_6, %c2, %c0_7, %c0_8] : memref<1x3x8x64xf32, #tpu.memory_space<vmem>>, vector<1x1x8x64xf32>
    %5 = vector.shape_cast %4 : vector<1x1x8x64xf32> to vector<8x64xf32>
    %6 = vector.broadcast %1 : vector<1x64xf32> to vector<8x64xf32>
    %7 = arith.mulf %6, %3 : vector<8x64xf32>
    %cst = arith.constant dense<0.000000e+00> : vector<8xf32>
    %8 = vector.multi_reduction <add>, %7, %cst [1] : vector<8x64xf32> to vector<8xf32>
    %9 = vector.shape_cast %8 : vector<8xf32> to vector<8x1xf32>
    %cst_9 = arith.constant 0.318471342 : f32
    %10 = vector.broadcast %cst_9 : f32 to vector<8x1xf32>
    %11 = arith.mulf %9, %10 : vector<8x1xf32>
    %12 = tpu.iota {dimensions = array<i32: 0>} : vector<8x1xi32>
    %c7_i32 = arith.constant 7 : i32
    %13 = vector.broadcast %c7_i32 : i32 to vector<8x1xi32>
    %14 = arith.cmpi slt, %12, %13 : vector<8x1xi32>
    %cst_10 = arith.constant 0xFF800000 : f32
    %15 = vector.broadcast %cst_10 : f32 to vector<8x1xf32>
    %16 = arith.select %14, %11, %15 : vector<8x1xi1>, vector<8x1xf32>
    %cst_11 = arith.constant dense<0xFF800000> : vector<1xf32>
    %17 = vector.multi_reduction <maximumf>, %16, %cst_11 [0] : vector<8x1xf32> to vector<1xf32>
    %18 = vector.shape_cast %17 : vector<1xf32> to vector<1x1xf32>
    %19 = vector.broadcast %18 : vector<1x1xf32> to vector<8x1xf32>
    %20 = arith.subf %16, %19 : vector<8x1xf32>
    %21 = math.exp %20 : vector<8x1xf32>
    %cst_12 = arith.constant dense<0.000000e+00> : vector<1xf32>
    %22 = vector.multi_reduction <add>, %21, %cst_12 [0] : vector<8x1xf32> to vector<1xf32>
    %23 = vector.shape_cast %22 : vector<1xf32> to vector<1x1xf32>
    %cst_13 = arith.constant 1.000000e+00 : f32
    %24 = vector.broadcast %cst_13 : f32 to vector<1x1xf32>
    %25 = arith.divf %24, %23 : vector<1x1xf32>
    %26 = vector.broadcast %25 : vector<1x1xf32> to vector<8x1xf32>
    %27 = arith.mulf %21, %26 : vector<8x1xf32>
    %28 = vector.broadcast %27 : vector<8x1xf32> to vector<8x64xf32>
    %29 = arith.mulf %28, %5 : vector<8x64xf32>
    %cst_14 = arith.constant dense<0.000000e+00> : vector<64xf32>
    %30 = vector.multi_reduction <add>, %29, %cst_14 [0] : vector<8x64xf32> to vector<64xf32>
    %31 = vector.shape_cast %30 : vector<64xf32> to vector<1x64xf32>
    %32 = vector.shape_cast %31 : vector<1x64xf32> to vector<1x1x64xf32>
    %c0_15 = arith.constant 0 : index
    %c0_16 = arith.constant 0 : index
    %c0_17 = arith.constant 0 : index
    %33 = vector.load %arg3[%c0_15, %c0_16, %c0_17] : memref<1x1x64xf32, #tpu.memory_space<vmem>>, vector<1x1x64xf32>
    tpu.vector_store %arg3[%c0_15, %c0_16, %c0_17], %32 {strides = array<i32>} : memref<1x1x64xf32, #tpu.memory_space<vmem>>, vector<1x1x64xf32>,
    return
  }
  func.func @transform_0(%arg0: i32, %arg1: memref<1xi32, #tpu.memory_space<smem>>) -> (i32, i32, i32, i32) {
    %c0_i32 = arith.constant 0 : i32
    %c0_i32_0 = arith.constant 0 : i32
    %c0_i32_1 = arith.constant 0 : i32
    %c0_i32_2 = arith.constant 0 : i32
    return %arg0, %c0_i32, %c0_i32_0, %c0_i32_1 : i32, i32, i32, i32
  }
  func.func @transform_1(%arg0: i32, %arg1: memref<1xi32, #tpu.memory_space<smem>>) -> (i32, i32, i32) {
    %c0_i32 = arith.constant 0 : i32
    %c0_i32_0 = arith.constant 0 : i32
    %c0_i32_1 = arith.constant 0 : i32
    return %arg0, %c0_i32, %c0_i32_0 : i32, i32, i32
  }
}

</mosaic_0001>

<llo_original>
// kernel: sdpa_dropout.1
$region0: #{sdpa_dropout.1}
  #allocation0 [shape = 'u32[]', space=smem, size = 0x4, offset = 0x4, fixed_abs, tag = 'smem constant byte address 0x4 - core index']
  #allocation1 [shape = 'u32[144,128]{1,0:T(1,128)}', space=vmem, size = 0x12000, scoped, tag = 'internal scratch']
  #allocation2 [shape = 's32[1]{0}', space=sflag, size = 0x4, scoped, tag = 'scoped memory for sdpa_dropout.1']
  #allocation3 [shape = 's32[1]{0:T(128)S(6)}', space=smem, size = 0x200, scoped, tag = 'prefetched SMEM operand 0']
  %s0 = inlined_call_operand.<no memory space> [shape: s32[1], index: 0, kind: input, shape index: {}]
  %s1 = inlined_call_operand.vmem [shape: f32[1,3,8,64], index: 1, kind: input, shape index: {}]
  %s2 = inlined_call_operand.hbm [shape: f32[1,1,64], index: 2, kind: output, shape index: {}]
  %s3 = sld [smem:[#allocation0]]
  $region14: #{sdpa_dropout.1} parent=0
    _
  %s5 = ssub.s32 1, %s3
  %s6 = scalar_select 0, %s5, %s3
  %7 = sst [smem:[#allocation3]] %s0
  $region1: #{sdpa_dropout.1} parent=0
    #allocation4 [shape = 'u8[512]{0}', space=vmem, size = 0x400, scoped, tag = 'output window, operand 0, single buffered']
    #allocation5 [shape = 's32[1]{0}', space=sflag, size = 0x4, scoped, tag = 'scoped memory for sdpa_dropout.1']
    %8 = vsyncpa [#allocation5], 0
    // Predicated region
    $region2: #{sdpa_dropout.1} parent=1 // pred_check
      _
    $region3: #{sdpa_dropout.1} parent=1 // pred_check_branch
      %10 = sbr.rel (0) target = $region5
    $region4: #{sdpa_dropout.1} parent=1 // pred_region
      _
    $region5: #{sdpa_dropout.1} parent=1 // pred_fallthru
      _
    %v11 = vld [vmem:[%s1] sm:$0x1]
    %s12 = scalar_lea.vmem %s1, 8
    %v13 = vld [vmem:[%s12] sm:$0xff]
    %s14 = scalar_lea.vmem %s1, 16
    %v15 = vld [vmem:[%s14] sm:$0xff]
    %v16 = vlaneseq
    %v17 = vshrl.u32 %v16, 7
    %v18 = vsub.s32 0, %v17
    %v19 = vrot.slane %v11, %v18
    %v20 = vmul.f32 %v19, %v13
    %vm21 = vcmask 523264
    %v22 = vsel %vm21, %v20, 0.0
    %23 = vadd.xlane.f32.xlu0 %v22
    %v24 = vpop.xlane.xlu0 %23
    %v25 = vmul.f32 %v24, 0.31847134
    %v26 = vlaneseq
    %v27 = vshrl.u32 %v26, 7
    %vm28 = vcmp.lt.s32.totalorder %v27, 7
    %v29 = vsel %vm28, %v25, -inf
    %v30 = vrot.slane %v29, 4
    %v31 = vmax.f32 %v29, %v30
    %v32 = vrot.slane %v31, 2
    %v33 = vmax.f32 %v31, %v32
    %v34 = vrot.slane %v33, 1
    %v35 = vmax.f32 %v33, %v34
    %v36 = vsub.f32 %v29, %v35
    %v37 = vmul.f32 %v36, 1.442695
    %v38 = vpow.pop %v37
    %v39 = vrot.slane %v38, 4
    %v40 = vadd.f32 %v38, %v39
    %v41 = vrot.slane %v40, 2
    %v42 = vadd.f32 %v40, %v41
    %v43 = vrot.slane %v42, 1
    %v44 = vadd.f32 %v42, %v43
    %v45 = vrcp.pop %v44
    %v46 = vmul.f32 1.0, %v45
    %v47 = vmul.f32 %v38, %v46
    %v48 = vmul.f32 %v47, %v15
    %v49 = vsel %vm21, %v48, 0.0
    %v50 = vrot.slane %v49, 4
    %v51 = vadd.f32 %v49, %v50
    %v52 = vrot.slane %v51, 2
    %v53 = vadd.f32 %v51, %v52
    %v54 = vrot.slane %v53, 1
    %v55 = vadd.f32 %v53, %v54
    %vm56 = vcmask 516096
    %57 = vst.msk [vmem:[#allocation4] sm:$0x1] %vm56, %v55
    // Predicated region
    $region6: #{sdpa_dropout.1} parent=1 // pred_check
      _
    $region7: #{sdpa_dropout.1} parent=1 // pred_check_branch
      %59 = sbr.rel (0) target = $region9
    $region8: #{sdpa_dropout.1} parent=1 // pred_region
      %s61 = ssub.s32 16, 16
      %62 = vsyncadd [#allocation5], %s61
      %s64 = sshll.u32 [#allocation4], 4
      %s65 = int_to_ptr.vmem [resolvable:$true] %s64
      %67 = dma.vmem_to_hbm [thread:$0]  %s65, 16, %s2, [#allocation5]
    $region9: #{sdpa_dropout.1} parent=1 // pred_fallthru
      _
    // Predicated region
    $region10: #{sdpa_dropout.1} parent=1 // pred_check
      _
    $region11: #{sdpa_dropout.1} parent=1 // pred_check_branch
      %69 = sbr.rel (0) target = $region13
    $region12: #{sdpa_dropout.1} parent=1 // pred_region
      %70 = dma.done [#allocation5], 16
    $region13: #{sdpa_dropout.1} parent=1 // pred_fallthru
      _
    %71 = vsyncpa [#allocation5], 1

</llo_original>
